<compile_context>
chip_gen: v7x
topology: tpu7x:2x2x1
jax: 0.10.0
libtpu: 0.0.40
codegen_flags: <defaults>
</compile_context>

<pallas_src>
import functools

import jax
import jax.numpy as jnp
from jax.experimental import pallas as pl
from jax.experimental.pallas import tpu as pltpu


def _round_up(x, m):
    return ((x + m - 1) // m) * m


def _pair(v):
    if isinstance(v, (tuple, list)):
        return int(v[0]), int(v[1])
    return int(v), int(v)


# ----------------------------- Pallas kernel -------------------------------

def _conv_gemm_kernel(a_ref, w_ref, b_ref, o_ref, acc_ref):
    # a_ref:   (tm, tk) bf16 im2col patch tile
    # w_ref:   (tk, tn) bf16 weight tile
    # b_ref:   (1, tn)  f32  bias row tile
    # o_ref:   (tm, tn) f32  output tile (resident across the K axis)
    # acc_ref: (tm, tn) f32  accumulator scratch
    k = pl.program_id(2)

    @pl.when(k == 0)
    def _init():
        acc_ref[...] = jnp.zeros_like(acc_ref)

    acc_ref[...] += jnp.dot(a_ref[...], w_ref[...],
                            preferred_element_type=jnp.float32)

    @pl.when(k == pl.num_programs(2) - 1)
    def _finalize():
        o_ref[...] = (acc_ref[...] + b_ref[...]).astype(o_ref.dtype)


def _conv_gemm(patches, w2d, bias_row, *, tm=512, max_tk=512):
    """patches: (M, K) bf16, w2d: (K, OCp) bf16, bias_row: (1, OCp) f32.

    Returns (M, OCp) f32.  OCp must already be a multiple of 128 (lane-dense).
    """
    M, K = patches.shape
    OCp = w2d.shape[1]
    assert OCp % 128 == 0

    # --- tile sizes ---------------------------------------------------------
    # M: big tiles (per-step overhead ~0.35us).  tm == M (when M < tm) is
    #    always layout-legal; ragged last block rows are clipped on writeback.
    tm = min(tm, M)
    # OC: 256 matches the v6e/v7x MXU width when possible, 128 otherwise (v5e).
    tn = 256 if OCp % 256 == 0 else 128
    # K: single block when small (typical 3x3 convs); otherwise 128-aligned
    #    tiles (zero-padded) so the reduction never blows the VMEM budget.
    if K <= max_tk:
        tk, Kp = K, K
    else:
        num_k = -(-K // max_tk)
        tk = _round_up(-(-K // num_k), 128)
        Kp = tk * num_k
        patches = jnp.pad(patches, ((0, 0), (0, Kp - K)))
        w2d = jnp.pad(w2d, ((0, Kp - K), (0, 0)))

    grid = (pl.cdiv(M, tm), OCp // tn, Kp // tk)

    cost = pl.CostEstimate(
        flops=2 * M * Kp * OCp,
        transcendentals=0,
        bytes_accessed=int(patches.size * patches.dtype.itemsize
                           + w2d.size * w2d.dtype.itemsize
                           + M * OCp * 4),
    )

    return pl.pallas_call(
        _conv_gemm_kernel,
        out_shape=jax.ShapeDtypeStruct((M, OCp), jnp.float32),
        grid_spec=pltpu.PrefetchScalarGridSpec(
            num_scalar_prefetch=0,
            grid=grid,
            in_specs=[
                pl.BlockSpec((tm, tk), lambda i, j, k: (i, k)),   # patches
                pl.BlockSpec((tk, tn), lambda i, j, k: (k, j)),   # weight
                pl.BlockSpec((1, tn), lambda i, j, k: (0, j)),    # bias
            ],
            out_specs=pl.BlockSpec((tm, tn), lambda i, j, k: (i, j)),
            scratch_shapes=[pltpu.VMEM((tm, tn), jnp.float32)],
        ),
        compiler_params=pltpu.CompilerParams(
            dimension_semantics=("parallel", "parallel", "arbitrary")),
        cost_estimate=cost,
    )(patches, w2d, bias_row)


# ----------------------------- MetaConv2d ----------------------------------

def meta_conv2d_forward(x_nchw, weight, bias, *, stride=1, padding=1,
                        dilation=1, groups=1):
    """Reproduces F.conv2d(x, weight, bias, stride, padding, dilation, groups).

    Only groups=1 is implemented (hot path = im2col GEMM in Pallas).
    """
    assert groups == 1, "groups != 1 not implemented"
    N, C, H, W = x_nchw.shape
    OC, IC, KH, KW = weight.shape
    assert IC == C

    sh, sw = _pair(stride)
    ph, pw = _pair(padding)
    dh, dw = _pair(dilation)

    OH = (H + 2 * ph - dh * (KH - 1) - 1) // sh + 1
    OW = (W + 2 * pw - dw * (KW - 1) - 1) // sw + 1

    # NCHW -> NHWC; cast to bf16 *before* the KH*KW im2col blow-up so the
    # inflated patch tensor moves half the bytes through HBM; pad spatially.
    x = jnp.transpose(x_nchw, (0, 2, 3, 1)).astype(jnp.bfloat16)
    x = jnp.pad(x, ((0, 0), (ph, ph), (pw, pw), (0, 0)))

    # im2col (glue, plain JAX): last-axis layout [kh, kw, c] to match the
    # weight reshape below.
    # TODO(synk): fuse this into the kernel (implicit GEMM) to drop the
    # KH*KW-times activation copy through HBM.
    slabs = []
    for kh in range(KH):
        for kw in range(KW):
            h0 = kh * dh
            w0 = kw * dw
            slab = x[:, h0:h0 + sh * (OH - 1) + 1:sh,
                        w0:w0 + sw * (OW - 1) + 1:sw, :]   # (N, OH, OW, C)
            slabs.append(slab)
    patches = jnp.concatenate(slabs, axis=-1)              # (N, OH, OW, KH*KW*C)
    patches = patches.reshape(N * OH * OW, KH * KW * C)

    # (OC, IC, KH, KW) -> (KH, KW, IC, OC) -> (KH*KW*IC, OC), zero-padded to a
    # lane-dense multiple of 128 output channels.
    OCp = _round_up(OC, 128)
    w2d = jnp.transpose(weight, (2, 3, 1, 0)).reshape(KH * KW * IC, OC)
    w2d = jnp.pad(w2d, ((0, 0), (0, OCp - OC))).astype(jnp.bfloat16)

    if bias is None:
        bias = jnp.zeros((OC,), dtype=jnp.float32)
    bias_row = jnp.pad(bias.astype(jnp.float32), (0, OCp - OC)).reshape(1, OCp)

    out = _conv_gemm(patches, w2d, bias_row)               # (N*OH*OW, OCp) f32
    out = out[:, :OC].reshape(N, OH, OW, OC)
    return jnp.transpose(out, (0, 3, 1, 2))                # NCHW


# ----------------------------- main -----------------------------------------

if __name__ == "__main__":
    # MetaConv2d(in_channels=4, out_channels=8, kernel_size=3, stride=1, padding=1)
    N, C, H, W = 2, 4, 16, 16
    OC, KH, KW = 8, 3, 3
    stride, padding, dilation, groups = 1, 1, 1, 1

    key = jax.random.PRNGKey(0)
    kx, kw_, kb = jax.random.split(key, 3)

    x = jax.random.normal(kx, (N, C, H, W), dtype=jnp.float32)
    # Deterministic synthetic parameters (shapes match nn.Conv2d).
    fan_in = C * KH * KW
    bound = 1.0 / (fan_in ** 0.5)
    weight = jax.random.uniform(kw_, (OC, C, KH, KW), minval=-bound,
                                maxval=bound, dtype=jnp.float32)
    bias = jax.random.uniform(kb, (OC,), minval=-bound, maxval=bound,
                              dtype=jnp.float32)

    fwd = jax.jit(functools.partial(meta_conv2d_forward, stride=stride,
                                    padding=padding, dilation=dilation,
                                    groups=groups))
    out = fwd(x, weight, bias)
    out = jax.block_until_ready(out)
    assert out.shape == (N, OC, H, W), out.shape

    conv = functools.partial(
        jax.lax.conv_general_dilated,
        window_strides=(stride, stride),
        padding=((padding, padding), (padding, padding)),
        rhs_dilation=(dilation, dilation),
        dimension_numbers=("NCHW", "OIHW", "NCHW"),
        feature_group_count=groups)

    # Tight check against a like-for-like bf16-input / f32-accumulate conv.
    ref_bf16 = conv(x.astype(jnp.bfloat16), weight.astype(jnp.bfloat16),
                    preferred_element_type=jnp.float32) + bias.reshape(1, OC, 1, 1)
    assert jnp.allclose(out, ref_bf16, atol=1e-3, rtol=1e-3), \
        float(jnp.max(jnp.abs(out - ref_bf16)))

    # Semantic check against the full-f32 F.conv2d reference (bf16 operands
    # introduce bounded quantization error, well inside this tolerance).
    ref = conv(x, weight) + bias.reshape(1, OC, 1, 1)
    assert jnp.allclose(out, ref, atol=3e-2, rtol=3e-2), \
        float(jnp.max(jnp.abs(out - ref)))

    print("KERNEL_OK")
</pallas_src>

<mosaic_0001>
module attributes {stable_mosaic.version = 11 : i64} {
  func.func @_conv_gemm_kernel(%arg0: i32, %arg1: i32, %arg2: i32, %arg3: memref<512x36xbf16, #tpu.memory_space<vmem>>, %arg4: memref<36x128xbf16, #tpu.memory_space<vmem>>, %arg5: memref<1x128xf32, #tpu.memory_space<vmem>>, %arg6: memref<512x128xf32, #tpu.memory_space<vmem>>, %arg7: memref<512x128xf32, #tpu.memory_space<vmem>>) attributes {dimension_semantics = [#tpu.dimension_semantics<parallel>, #tpu.dimension_semantics<parallel>, #tpu.dimension_semantics<arbitrary>], iteration_bounds = array<i64: 1, 1, 1>, scalar_prefetch = 0 : i64, scratch_operands = 1 : i64, tpu.core_type = #tpu.core_type<tc>, window_params = [{transform_indices = @transform_0, window_bounds = array<i64: 512, 36>}, {transform_indices = @transform_1, window_bounds = array<i64: 36, 128>}, {transform_indices = @transform_2, window_bounds = array<i64: 1, 128>}, {transform_indices = @transform_3, window_bounds = array<i64: 512, 128>}]} {
    %c0_i32 = arith.constant 0 : i32
    %0 = arith.cmpi eq, %arg2, %c0_i32 : i32
    %1 = arith.extui %0 : i1 to i32
    %c0_i32_0 = arith.constant 0 : i32
    %2 = arith.cmpi ne, %1, %c0_i32_0 : i32
    scf.if %2 {
      %cst_10 = arith.constant 0.000000e+00 : f32
      %12 = vector.broadcast %cst_10 : f32 to vector<512x128xf32>
      %c0_11 = arith.constant 0 : index
      %c0_12 = arith.constant 0 : index
      %13 = vector.load %arg7[%c0_11, %c0_12] : memref<512x128xf32, #tpu.memory_space<vmem>>, vector<512x128xf32>
      tpu.vector_store %arg7[%c0_11, %c0_12], %12 {strides = array<i32>} : memref<512x128xf32, #tpu.memory_space<vmem>>, vector<512x128xf32>,
    } else {
    }
    %c0 = arith.constant 0 : index
    %c0_1 = arith.constant 0 : index
    %3 = vector.load %arg7[%c0, %c0_1] : memref<512x128xf32, #tpu.memory_space<vmem>>, vector<512x128xf32>
    %c0_2 = arith.constant 0 : index
    %c0_3 = arith.constant 0 : index
    %4 = vector.load %arg3[%c0_2, %c0_3] : memref<512x36xbf16, #tpu.memory_space<vmem>>, vector<512x36xbf16>
    %c0_4 = arith.constant 0 : index
    %c0_5 = arith.constant 0 : index
    %5 = vector.load %arg4[%c0_4, %c0_5] : memref<36x128xbf16, #tpu.memory_space<vmem>>, vector<36x128xbf16>
    %cst = arith.constant dense<0.000000e+00> : vector<512x128xf32>
    %6 = tpu.matmul %4, %5, %cst {dimension_numbers = #tpu.dot_dimension_numbers<[1], [0], [0], [1], [0, 0, 1, 1], [], []>} : vector<512x36xbf16>, vector<36x128xbf16>, vector<512x128xf32> -> vector<512x128xf32>
    %7 = arith.addf %3, %6 : vector<512x128xf32>
    %c0_6 = arith.constant 0 : index
    %c0_7 = arith.constant 0 : index
    %8 = vector.load %arg7[%c0_6, %c0_7] : memref<512x128xf32, #tpu.memory_space<vmem>>, vector<512x128xf32>
    tpu.vector_store %arg7[%c0_6, %c0_7], %7 {strides = array<i32>} : memref<512x128xf32, #tpu.memory_space<vmem>>, vector<512x128xf32>,
    %c0_i32_8 = arith.constant 0 : i32
    %9 = arith.cmpi eq, %arg2, %c0_i32_8 : i32
    %10 = arith.extui %9 : i1 to i32
    %c0_i32_9 = arith.constant 0 : i32
    %11 = arith.cmpi ne, %10, %c0_i32_9 : i32
    scf.if %11 {
      %c0_10 = arith.constant 0 : index
      %c0_11 = arith.constant 0 : index
      %12 = vector.load %arg7[%c0_10, %c0_11] : memref<512x128xf32, #tpu.memory_space<vmem>>, vector<512x128xf32>
      %c0_12 = arith.constant 0 : index
      %c0_13 = arith.constant 0 : index
      %13 = vector.load %arg5[%c0_12, %c0_13] : memref<1x128xf32, #tpu.memory_space<vmem>>, vector<1x128xf32>
      %14 = vector.broadcast %13 : vector<1x128xf32> to vector<512x128xf32>
      %15 = arith.addf %12, %14 : vector<512x128xf32>
      %c0_14 = arith.constant 0 : index
      %c0_15 = arith.constant 0 : index
      %16 = vector.load %arg6[%c0_14, %c0_15] : memref<512x128xf32, #tpu.memory_space<vmem>>, vector<512x128xf32>
      tpu.vector_store %arg6[%c0_14, %c0_15], %15 {strides = array<i32>} : memref<512x128xf32, #tpu.memory_space<vmem>>, vector<512x128xf32>,
    } else {
    }
    return
  }
  func.func @transform_0(%arg0: i32, %arg1: i32, %arg2: i32) -> (i32, i32) {
    %c0_i32 = arith.constant 0 : i32
    return %arg0, %arg2 : i32, i32
  }
  func.func @transform_1(%arg0: i32, %arg1: i32, %arg2: i32) -> (i32, i32) {
    %c0_i32 = arith.constant 0 : i32
    return %arg2, %arg1 : i32, i32
  }
  func.func @transform_2(%arg0: i32, %arg1: i32, %arg2: i32) -> (i32, i32) {
    %c0_i32 = arith.constant 0 : i32
    %c0_i32_0 = arith.constant 0 : i32
    return %c0_i32, %arg1 : i32, i32
  }
  func.func @transform_3(%arg0: i32, %arg1: i32, %arg2: i32) -> (i32, i32) {
    %c0_i32 = arith.constant 0 : i32
    return %arg0, %arg1 : i32, i32
  }
}

</mosaic_0001>

<llo_original>
// kernel: meta_conv2d_forward.1
$region0: #{meta_conv2d_forward.1}
  #allocation0 [shape = 'u32[]', space=smem, size = 0x4, offset = 0x4, fixed_abs, tag = 'smem constant byte address 0x4 - core index']
  #allocation1 [shape = 'u32[144,128]{1,0:T(1,128)}', space=vmem, size = 0x12000, scoped, tag = 'internal scratch']
  #allocation2 [shape = 'f32[512,128]{1,0:T(8,128)}', space=vmem, size = 0x40000, scoped, tag = 'scratch operand']
  %s0 = inlined_call_operand.vmem [shape: bf16[512,36], index: 0, kind: input, shape index: {}]
  %s1 = inlined_call_operand.vmem [shape: bf16[36,128], index: 1, kind: input, shape index: {}]
  %s2 = inlined_call_operand.vmem [shape: f32[1,128], index: 2, kind: input, shape index: {}]
  %s3 = inlined_call_operand.vmem [shape: f32[512,128], index: 3, kind: output, shape index: {}]
  %s4 = sld [smem:[#allocation0]]
  $region30: #{meta_conv2d_forward.1} parent=0
    _
  %s6 = ssub.s32 1, %s4
  %s7 = scalar_select 0, %s6, %s4
  // Predicated region
  $region2: #{meta_conv2d_forward.1} parent=0 // pred_check
    _
  $region3: #{meta_conv2d_forward.1} parent=0 // pred_check_branch
    %9 = sbr.rel (0) target = $region5
  $region4: #{meta_conv2d_forward.1} parent=0 // pred_region
    _
  $region5: #{meta_conv2d_forward.1} parent=0 // pred_fallthru
    _
  // Predicated region
  $region6: #{meta_conv2d_forward.1} parent=0 // pred_check
    _
  $region7: #{meta_conv2d_forward.1} parent=0 // pred_check_branch
    %11 = sbr.rel (0) target = $region9
  $region8: #{meta_conv2d_forward.1} parent=0 // pred_region
    _
  $region9: #{meta_conv2d_forward.1} parent=0 // pred_fallthru
    _
  // Predicated region
  $region10: #{meta_conv2d_forward.1} parent=0 // pred_check
    _
  $region11: #{meta_conv2d_forward.1} parent=0 // pred_check_branch
    %13 = sbr.rel (0) target = $region13
  $region12: #{meta_conv2d_forward.1} parent=0 // pred_region
    _
  $region13: #{meta_conv2d_forward.1} parent=0 // pred_fallthru
    _
  %p15 = scmp.eq.s32.totalorder 0, 0
  // Predicated region
  $region14: #{meta_conv2d_forward.1} parent=0 // pred_check
    %p16 = pneg %p15
  $region15: #{meta_conv2d_forward.1} parent=0 // pred_check_branch
    %18 = sbr.rel (%p16) target = $region17
  $region16: #{meta_conv2d_forward.1} parent=0 // pred_region
    %19 = vst [vmem:[#allocation2] sm:$0xff] 0.0
    %20 = vst [vmem:[#allocation2 + $0x8] sm:$0xff] 0.0
    %21 = vst [vmem:[#allocation2 + $0x10] sm:$0xff] 0.0
    %22 = vst [vmem:[#allocation2 + $0x18] sm:$0xff] 0.0
    %23 = vst [vmem:[#allocation2 + $0x20] sm:$0xff] 0.0
    %24 = vst [vmem:[#allocation2 + $0x28] sm:$0xff] 0.0
    %25 = vst [vmem:[#allocation2 + $0x30] sm:$0xff] 0.0
    %26 = vst [vmem:[#allocation2 + $0x38] sm:$0xff] 0.0
    %27 = vst [vmem:[#allocation2 + $0x40] sm:$0xff] 0.0
    %28 = vst [vmem:[#allocation2 + $0x48] sm:$0xff] 0.0
    %29 = vst [vmem:[#allocation2 + $0x50] sm:$0xff] 0.0
    %30 = vst [vmem:[#allocation2 + $0x58] sm:$0xff] 0.0
    %31 = vst [vmem:[#allocation2 + $0x60] sm:$0xff] 0.0
    %32 = vst [vmem:[#allocation2 + $0x68] sm:$0xff] 0.0
    %33 = vst [vmem:[#allocation2 + $0x70] sm:$0xff] 0.0
    %34 = vst [vmem:[#allocation2 + $0x78] sm:$0xff] 0.0
    %35 = vst [vmem:[#allocation2 + $0x80] sm:$0xff] 0.0
    %36 = vst [vmem:[#allocation2 + $0x88] sm:$0xff] 0.0
    %37 = vst [vmem:[#allocation2 + $0x90] sm:$0xff] 0.0
    %38 = vst [vmem:[#allocation2 + $0x98] sm:$0xff] 0.0
    %39 = vst [vmem:[#allocation2 + $0xa0] sm:$0xff] 0.0
    %40 = vst [vmem:[#allocation2 + $0xa8] sm:$0xff] 0.0
    %41 = vst [vmem:[#allocation2 + $0xb0] sm:$0xff] 0.0
    %42 = vst [vmem:[#allocation2 + $0xb8] sm:$0xff] 0.0
    %43 = vst [vmem:[#allocation2 + $0xc0] sm:$0xff] 0.0
    %44 = vst [vmem:[#allocation2 + $0xc8] sm:$0xff] 0.0
    %45 = vst [vmem:[#allocation2 + $0xd0] sm:$0xff] 0.0
    %46 = vst [vmem:[#allocation2 + $0xd8] sm:$0xff] 0.0
    %47 = vst [vmem:[#allocation2 + $0xe0] sm:$0xff] 0.0
    %48 = vst [vmem:[#allocation2 + $0xe8] sm:$0xff] 0.0
    %49 = vst [vmem:[#allocation2 + $0xf0] sm:$0xff] 0.0
    %50 = vst [vmem:[#allocation2 + $0xf8] sm:$0xff] 0.0
    %51 = vst [vmem:[#allocation2 + $0x100] sm:$0xff] 0.0
    %52 = vst [vmem:[#allocation2 + $0x108] sm:$0xff] 0.0
    %53 = vst [vmem:[#allocation2 + $0x110] sm:$0xff] 0.0
    %54 = vst [vmem:[#allocation2 + $0x118] sm:$0xff] 0.0
    %55 = vst [vmem:[#allocation2 + $0x120] sm:$0xff] 0.0
    %56 = vst [vmem:[#allocation2 + $0x128] sm:$0xff] 0.0
    %57 = vst [vmem:[#allocation2 + $0x130] sm:$0xff] 0.0
    %58 = vst [vmem:[#allocation2 + $0x138] sm:$0xff] 0.0
    %59 = vst [vmem:[#allocation2 + $0x140] sm:$0xff] 0.0
    %60 = vst [vmem:[#allocation2 + $0x148] sm:$0xff] 0.0
    %61 = vst [vmem:[#allocation2 + $0x150] sm:$0xff] 0.0
    %62 = vst [vmem:[#allocation2 + $0x158] sm:$0xff] 0.0
    %63 = vst [vmem:[#allocation2 + $0x160] sm:$0xff] 0.0
    %64 = vst [vmem:[#allocation2 + $0x168] sm:$0xff] 0.0
    %65 = vst [vmem:[#allocation2 + $0x170] sm:$0xff] 0.0
    %66 = vst [vmem:[#allocation2 + $0x178] sm:$0xff] 0.0
    %67 = vst [vmem:[#allocation2 + $0x180] sm:$0xff] 0.0
    %68 = vst [vmem:[#allocation2 + $0x188] sm:$0xff] 0.0
    %69 = vst [vmem:[#allocation2 + $0x190] sm:$0xff] 0.0
    %70 = vst [vmem:[#allocation2 + $0x198] sm:$0xff] 0.0
    %71 = vst [vmem:[#allocation2 + $0x1a0] sm:$0xff] 0.0
    %72 = vst [vmem:[#allocation2 + $0x1a8] sm:$0xff] 0.0
    %73 = vst [vmem:[#allocation2 + $0x1b0] sm:$0xff] 0.0
    %74 = vst [vmem:[#allocation2 + $0x1b8] sm:$0xff] 0.0
    %75 = vst [vmem:[#allocation2 + $0x1c0] sm:$0xff] 0.0
    %76 = vst [vmem:[#allocation2 + $0x1c8] sm:$0xff] 0.0
    %77 = vst [vmem:[#allocation2 + $0x1d0] sm:$0xff] 0.0
    %78 = vst [vmem:[#allocation2 + $0x1d8] sm:$0xff] 0.0
    %79 = vst [vmem:[#allocation2 + $0x1e0] sm:$0xff] 0.0
    %80 = vst [vmem:[#allocation2 + $0x1e8] sm:$0xff] 0.0
    %81 = vst [vmem:[#allocation2 + $0x1f0] sm:$0xff] 0.0
    %82 = vst [vmem:[#allocation2 + $0x1f8] sm:$0xff] 0.0
  $region17: #{meta_conv2d_forward.1} parent=0 // pred_fallthru
    _
  %v83 = vld [vmem:[#allocation2] sm:$0xff]
  %v84 = vld [vmem:[#allocation2 + $0x8] sm:$0xff]
  %v85 = vld [vmem:[#allocation2 + $0x10] sm:$0xff]
  %v86 = vld [vmem:[#allocation2 + $0x18] sm:$0xff]
  %v87 = vld [vmem:[#allocation2 + $0x20] sm:$0xff]
  %v88 = vld [vmem:[#allocation2 + $0x28] sm:$0xff]
  %v89 = vld [vmem:[#allocation2 + $0x30] sm:$0xff]
  %v90 = vld [vmem:[#allocation2 + $0x38] sm:$0xff]
  %v91 = vld [vmem:[#allocation2 + $0x40] sm:$0xff]
  %v92 = vld [vmem:[#allocation2 + $0x48] sm:$0xff]
  %v93 = vld [vmem:[#allocation2 + $0x50] sm:$0xff]
  %v94 = vld [vmem:[#allocation2 + $0x58] sm:$0xff]
  %v95 = vld [vmem:[#allocation2 + $0x60] sm:$0xff]
  %v96 = vld [vmem:[#allocation2 + $0x68] sm:$0xff]
  %v97 = vld [vmem:[#allocation2 + $0x70] sm:$0xff]
  %v98 = vld [vmem:[#allocation2 + $0x78] sm:$0xff]
  %v99 = vld [vmem:[#allocation2 + $0x80] sm:$0xff]
  %v100 = vld [vmem:[#allocation2 + $0x88] sm:$0xff]
  %v101 = vld [vmem:[#allocation2 + $0x90] sm:$0xff]
  %v102 = vld [vmem:[#allocation2 + $0x98] sm:$0xff]
  %v103 = vld [vmem:[#allocation2 + $0xa0] sm:$0xff]
  %v104 = vld [vmem:[#allocation2 + $0xa8] sm:$0xff]
  %v105 = vld [vmem:[#allocation2 + $0xb0] sm:$0xff]
  %v106 = vld [vmem:[#allocation2 + $0xb8] sm:$0xff]
  %v107 = vld [vmem:[#allocation2 + $0xc0] sm:$0xff]
  %v108 = vld [vmem:[#allocation2 + $0xc8] sm:$0xff]
  %v109 = vld [vmem:[#allocation2 + $0xd0] sm:$0xff]
  %v110 = vld [vmem:[#allocation2 + $0xd8] sm:$0xff]
  %v111 = vld [vmem:[#allocation2 + $0xe0] sm:$0xff]
  %v112 = vld [vmem:[#allocation2 + $0xe8] sm:$0xff]
  %v113 = vld [vmem:[#allocation2 + $0xf0] sm:$0xff]
  %v114 = vld [vmem:[#allocation2 + $0xf8] sm:$0xff]
  %v115 = vld [vmem:[#allocation2 + $0x100] sm:$0xff]
  %v116 = vld [vmem:[#allocation2 + $0x108] sm:$0xff]
  %v117 = vld [vmem:[#allocation2 + $0x110] sm:$0xff]
  %v118 = vld [vmem:[#allocation2 + $0x118] sm:$0xff]
  %v119 = vld [vmem:[#allocation2 + $0x120] sm:$0xff]
  %v120 = vld [vmem:[#allocation2 + $0x128] sm:$0xff]
  %v121 = vld [vmem:[#allocation2 + $0x130] sm:$0xff]
  %v122 = vld [vmem:[#allocation2 + $0x138] sm:$0xff]
  %v123 = vld [vmem:[#allocation2 + $0x140] sm:$0xff]
  %v124 = vld [vmem:[#allocation2 + $0x148] sm:$0xff]
  %v125 = vld [vmem:[#allocation2 + $0x150] sm:$0xff]
  %v126 = vld [vmem:[#allocation2 + $0x158] sm:$0xff]
  %v127 = vld [vmem:[#allocation2 + $0x160] sm:$0xff]
  %v128 = vld [vmem:[#allocation2 + $0x168] sm:$0xff]
  %v129 = vld [vmem:[#allocation2 + $0x170] sm:$0xff]
  %v130 = vld [vmem:[#allocation2 + $0x178] sm:$0xff]
  %v131 = vld [vmem:[#allocation2 + $0x180] sm:$0xff]
  %v132 = vld [vmem:[#allocation2 + $0x188] sm:$0xff]
  %v133 = vld [vmem:[#allocation2 + $0x190] sm:$0xff]
  %v134 = vld [vmem:[#allocation2 + $0x198] sm:$0xff]
  %v135 = vld [vmem:[#allocation2 + $0x1a0] sm:$0xff]
  %v136 = vld [vmem:[#allocation2 + $0x1a8] sm:$0xff]
  %v137 = vld [vmem:[#allocation2 + $0x1b0] sm:$0xff]
  %v138 = vld [vmem:[#allocation2 + $0x1b8] sm:$0xff]
  %v139 = vld [vmem:[#allocation2 + $0x1c0] sm:$0xff]
  %v140 = vld [vmem:[#allocation2 + $0x1c8] sm:$0xff]
  %v141 = vld [vmem:[#allocation2 + $0x1d0] sm:$0xff]
  %v142 = vld [vmem:[#allocation2 + $0x1d8] sm:$0xff]
  %v143 = vld [vmem:[#allocation2 + $0x1e0] sm:$0xff]
  %v144 = vld [vmem:[#allocation2 + $0x1e8] sm:$0xff]
  %v145 = vld [vmem:[#allocation2 + $0x1f0] sm:$0xff]
  %v146 = vld [vmem:[#allocation2 + $0x1f8] sm:$0xff]
  %v147 = vld [vmem:[%s0] sm:$0xf]
  %v148 = vld [vmem:[%s0 + $0x4] sm:$0xf]
  %v149 = vld [vmem:[%s0 + $0x8] sm:$0xf]
  %v150 = vld [vmem:[%s0 + $0xc] sm:$0xf]
  %v151 = vld [vmem:[%s0 + $0x10] sm:$0xf]
  %v152 = vld [vmem:[%s0 + $0x14] sm:$0xf]
  %v153 = vld [vmem:[%s0 + $0x18] sm:$0xf]
  %v154 = vld [vmem:[%s0 + $0x1c] sm:$0xf]
  %v155 = vld [vmem:[%s0 + $0x20] sm:$0xf]
  %v156 = vld [vmem:[%s0 + $0x24] sm:$0xf]
  %v157 = vld [vmem:[%s0 + $0x28] sm:$0xf]
  %v158 = vld [vmem:[%s0 + $0x2c] sm:$0xf]
  %v159 = vld [vmem:[%s0 + $0x30] sm:$0xf]
  %v160 = vld [vmem:[%s0 + $0x34] sm:$0xf]
  %v161 = vld [vmem:[%s0 + $0x38] sm:$0xf]
  %v162 = vld [vmem:[%s0 + $0x3c] sm:$0xf]
  %v163 = vld [vmem:[%s0 + $0x40] sm:$0xf]
  %v164 = vld [vmem:[%s0 + $0x44] sm:$0xf]
  %v165 = vld [vmem:[%s0 + $0x48] sm:$0xf]
  %v166 = vld [vmem:[%s0 + $0x4c] sm:$0xf]
  %v167 = vld [vmem:[%s0 + $0x50] sm:$0xf]
  %v168 = vld [vmem:[%s0 + $0x54] sm:$0xf]
  %v169 = vld [vmem:[%s0 + $0x58] sm:$0xf]
  %v170 = vld [vmem:[%s0 + $0x5c] sm:$0xf]
  %v171 = vld [vmem:[%s0 + $0x60] sm:$0xf]
  %v172 = vld [vmem:[%s0 + $0x64] sm:$0xf]
  %v173 = vld [vmem:[%s0 + $0x68] sm:$0xf]
  %v174 = vld [vmem:[%s0 + $0x6c] sm:$0xf]
  %v175 = vld [vmem:[%s0 + $0x70] sm:$0xf]
  %v176 = vld [vmem:[%s0 + $0x74] sm:$0xf]
  %v177 = vld [vmem:[%s0 + $0x78] sm:$0xf]
  %v178 = vld [vmem:[%s0 + $0x7c] sm:$0xf]
  %v179 = vld [vmem:[%s0 + $0x80] sm:$0xf]
  %v180 = vld [vmem:[%s0 + $0x84] sm:$0xf]
  %v181 = vld [vmem:[%s0 + $0x88] sm:$0xf]
  %v182 = vld [vmem:[%s0 + $0x8c] sm:$0xf]
  %v183 = vld [vmem:[%s0 + $0x90] sm:$0xf]
  %v184 = vld [vmem:[%s0 + $0x94] sm:$0xf]
  %v185 = vld [vmem:[%s0 + $0x98] sm:$0xf]
  %v186 = vld [vmem:[%s0 + $0x9c] sm:$0xf]
  %v187 = vld [vmem:[%s0 + $0xa0] sm:$0xf]
  %v188 = vld [vmem:[%s0 + $0xa4] sm:$0xf]
  %v189 = vld [vmem:[%s0 + $0xa8] sm:$0xf]
  %v190 = vld [vmem:[%s0 + $0xac] sm:$0xf]
  %v191 = vld [vmem:[%s0 + $0xb0] sm:$0xf]
  %v192 = vld [vmem:[%s0 + $0xb4] sm:$0xf]
  %v193 = vld [vmem:[%s0 + $0xb8] sm:$0xf]
  %v194 = vld [vmem:[%s0 + $0xbc] sm:$0xf]
  %v195 = vld [vmem:[%s0 + $0xc0] sm:$0xf]
  %v196 = vld [vmem:[%s0 + $0xc4] sm:$0xf]
  %v197 = vld [vmem:[%s0 + $0xc8] sm:$0xf]
  %v198 = vld [vmem:[%s0 + $0xcc] sm:$0xf]
  %v199 = vld [vmem:[%s0 + $0xd0] sm:$0xf]
  %v200 = vld [vmem:[%s0 + $0xd4] sm:$0xf]
  %v201 = vld [vmem:[%s0 + $0xd8] sm:$0xf]
  %v202 = vld [vmem:[%s0 + $0xdc] sm:$0xf]
  %v203 = vld [vmem:[%s0 + $0xe0] sm:$0xf]
  %v204 = vld [vmem:[%s0 + $0xe4] sm:$0xf]
  %v205 = vld [vmem:[%s0 + $0xe8] sm:$0xf]
  %v206 = vld [vmem:[%s0 + $0xec] sm:$0xf]
  %v207 = vld [vmem:[%s0 + $0xf0] sm:$0xf]
  %v208 = vld [vmem:[%s0 + $0xf4] sm:$0xf]
  %v209 = vld [vmem:[%s0 + $0xf8] sm:$0xf]
  %v210 = vld [vmem:[%s0 + $0xfc] sm:$0xf]
  %v211 = vld [vmem:[%s1] sm:$0xf]
  %v212 = vld [vmem:[%s1 + $0x4] sm:$0xf]
  %v213 = vld [vmem:[%s1 + $0x8] sm:$0xf]
  %v214 = vld [vmem:[%s1 + $0xc] sm:$0xf]
  %v215 = vld [vmem:[%s1 + $0x10] sm:$0x3]
  %v280 = vunpack.c.l.b16 %v147
  %v281 = vunpack.c.l.b16 %v148
  %v282 = vunpack.c.l.b16 %v149
  %v283 = vunpack.c.l.b16 %v150
  %v284 = vunpack.c.l.b16 %v151
  %v285 = vunpack.c.l.b16 %v152
  %v286 = vunpack.c.l.b16 %v153
  %v287 = vunpack.c.l.b16 %v154
  %v288 = vunpack.c.l.b16 %v155
  %v289 = vunpack.c.l.b16 %v156
  %v290 = vunpack.c.l.b16 %v157
  %v291 = vunpack.c.l.b16 %v158
  %v292 = vunpack.c.l.b16 %v159
  %v293 = vunpack.c.l.b16 %v160
  %v294 = vunpack.c.l.b16 %v161
  %v295 = vunpack.c.l.b16 %v162
  %v296 = vunpack.c.l.b16 %v163
  %v297 = vunpack.c.l.b16 %v164
  %v298 = vunpack.c.l.b16 %v165
  %v299 = vunpack.c.l.b16 %v166
  %v300 = vunpack.c.l.b16 %v167
  %v301 = vunpack.c.l.b16 %v168
  %v302 = vunpack.c.l.b16 %v169
  %v303 = vunpack.c.l.b16 %v170
  %v304 = vunpack.c.l.b16 %v171
  %v305 = vunpack.c.l.b16 %v172
  %v306 = vunpack.c.l.b16 %v173
  %v307 = vunpack.c.l.b16 %v174
  %v308 = vunpack.c.l.b16 %v175
  %v309 = vunpack.c.l.b16 %v176
  %v310 = vunpack.c.l.b16 %v177
  %v311 = vunpack.c.l.b16 %v178
  %v312 = vunpack.c.l.b16 %v179
  %v313 = vunpack.c.l.b16 %v180
  %v314 = vunpack.c.l.b16 %v181
  %v315 = vunpack.c.l.b16 %v182
  %v316 = vunpack.c.l.b16 %v183
  %v317 = vunpack.c.l.b16 %v184
  %v318 = vunpack.c.l.b16 %v185
  %v319 = vunpack.c.l.b16 %v186
  %v320 = vunpack.c.l.b16 %v187
  %v321 = vunpack.c.l.b16 %v188
  %v322 = vunpack.c.l.b16 %v189
  %v323 = vunpack.c.l.b16 %v190
  %v324 = vunpack.c.l.b16 %v191
  %v325 = vunpack.c.l.b16 %v192
  %v326 = vunpack.c.l.b16 %v193
  %v327 = vunpack.c.l.b16 %v194
  %v328 = vunpack.c.l.b16 %v195
  %v329 = vunpack.c.l.b16 %v196
  %v330 = vunpack.c.l.b16 %v197
  %v331 = vunpack.c.l.b16 %v198
  %v332 = vunpack.c.l.b16 %v199
  %v333 = vunpack.c.l.b16 %v200
  %v334 = vunpack.c.l.b16 %v201
  %v335 = vunpack.c.l.b16 %v202
  %v336 = vunpack.c.l.b16 %v203
  %v337 = vunpack.c.l.b16 %v204
  %v338 = vunpack.c.l.b16 %v205
  %v339 = vunpack.c.l.b16 %v206
  %v340 = vunpack.c.l.b16 %v207
  %v341 = vunpack.c.l.b16 %v208
  %v342 = vunpack.c.l.b16 %v209
  %v343 = vunpack.c.l.b16 %v210
  %v344 = vpack.c.b16 %v281, %v280
  %v345 = vpack.c.b16 %v283, %v282
  %v346 = vpack.c.b16 %v285, %v284
  %v347 = vpack.c.b16 %v287, %v286
  %v348 = vpack.c.b16 %v289, %v288
  %v349 = vpack.c.b16 %v291, %v290
  %v350 = vpack.c.b16 %v293, %v292
  %v351 = vpack.c.b16 %v295, %v294
  %v352 = vpack.c.b16 %v297, %v296
  %v353 = vpack.c.b16 %v299, %v298
  %v354 = vpack.c.b16 %v301, %v300
  %v355 = vpack.c.b16 %v303, %v302
  %v356 = vpack.c.b16 %v305, %v304
  %v357 = vpack.c.b16 %v307, %v306
  %v358 = vpack.c.b16 %v309, %v308
  %v359 = vpack.c.b16 %v311, %v310
  %v360 = vpack.c.b16 %v313, %v312
  %v361 = vpack.c.b16 %v315, %v314
  %v362 = vpack.c.b16 %v317, %v316
  %v363 = vpack.c.b16 %v319, %v318
  %v364 = vpack.c.b16 %v321, %v320
  %v365 = vpack.c.b16 %v323, %v322
  %v366 = vpack.c.b16 %v325, %v324
  %v367 = vpack.c.b16 %v327, %v326
  %v368 = vpack.c.b16 %v329, %v328
  %v369 = vpack.c.b16 %v331, %v330
  %v370 = vpack.c.b16 %v333, %v332
  %v371 = vpack.c.b16 %v335, %v334
  %v372 = vpack.c.b16 %v337, %v336
  %v373 = vpack.c.b16 %v339, %v338
  %v374 = vpack.c.b16 %v341, %v340
  %v375 = vpack.c.b16 %v343, %v342
  %v381 = vunpack.c.l.b16 %v211
  %v382 = vunpack.c.l.b16 %v212
  %v383 = vunpack.c.l.b16 %v213
  %v384 = vunpack.c.l.b16 %v214
  %v385 = vunpack.c.l.b16 %v215
  %v386 = vpack.c.b16 %v382, %v381
  %v387 = vpack.c.b16 %v384, %v383
  %v388 = vpack.c.b16 %v385, %v385
  %vm391 = vcmask 293888
  %v393 = vsel %vm391, %v344, 0
  %v396 = vsel %vm391, %v345, 0
  %v399 = vsel %vm391, %v346, 0
  %v402 = vsel %vm391, %v347, 0
  %v405 = vsel %vm391, %v348, 0
  %v408 = vsel %vm391, %v349, 0
  %v411 = vsel %vm391, %v350, 0
  %v414 = vsel %vm391, %v351, 0
  %v417 = vsel %vm391, %v352, 0
  %v420 = vsel %vm391, %v353, 0
  %v423 = vsel %vm391, %v354, 0
  %v426 = vsel %vm391, %v355, 0
  %v429 = vsel %vm391, %v356, 0
  %v432 = vsel %vm391, %v357, 0
  %v435 = vsel %vm391, %v358, 0
  %v438 = vsel %vm391, %v359, 0
  %v441 = vsel %vm391, %v360, 0
  %v444 = vsel %vm391, %v361, 0
  %v447 = vsel %vm391, %v362, 0
  %v450 = vsel %vm391, %v363, 0
  %v453 = vsel %vm391, %v364, 0
  %v456 = vsel %vm391, %v365, 0
  %v459 = vsel %vm391, %v366, 0
  %v462 = vsel %vm391, %v367, 0
  %v465 = vsel %vm391, %v368, 0
  %v468 = vsel %vm391, %v369, 0
  %v471 = vsel %vm391, %v370, 0
  %v474 = vsel %vm391, %v371, 0
  %v477 = vsel %vm391, %v372, 0
  %v480 = vsel %vm391, %v373, 0
  %v483 = vsel %vm391, %v374, 0
  %v486 = vsel %vm391, %v375, 0
  %vm488 = vcmask 1041408
  %v490 = vsel %vm488, %v388, 0
  %492 = vmatprep.subr.bf16.mxu0 0
  %493 = vmatpush1.bf16.msra.mxu0 %v386
  %494 = vmatprep.subr.bf16.mxu0 0
  %495 = vmatpush1.bf16.msra.mxu0 %v387
  %496 = vmatprep.subr.bf16.mxu0 0
  %497 = vmatpush1.bf16.msra.mxu0 %v490
  %498 = vmatprep.subr.bf16.mxu0 0
  %499 = vmatpush1.bf16.msra.mxu0 0
  %500 = vmatprep.subr.bf16.mxu0 0
  %501 = vmatpush1.bf16.msra.mxu0 0
  %502 = vmatprep.subr.bf16.mxu0 0
  %503 = vmatpush1.bf16.msra.mxu0 0
  %504 = vmatprep.subr.bf16.mxu0 0
  %505 = vmatpush1.bf16.msra.mxu0 0
  %506 = vmatprep.subr.bf16.mxu0 0
  %507 = vmatpush1.bf16.msra.mxu0 0
  %508 = vmatprep.subr.bf16.mxu0 0
  %509 = vmatpush1.bf16.msra.mxu0 0
  %510 = vmatprep.subr.bf16.mxu0 0
  %511 = vmatpush1.bf16.msra.mxu0 0
  %512 = vmatprep.subr.bf16.mxu0 0
  %513 = vmatpush1.bf16.msra.mxu0 0
  %514 = vmatprep.subr.bf16.mxu0 0
  %515 = vmatpush1.bf16.msra.mxu0 0
  %516 = vmatprep.subr.bf16.mxu0 0
  %517 = vmatpush1.bf16.msra.mxu0 0
  %518 = vmatprep.subr.bf16.mxu0 0
  %519 = vmatpush1.bf16.msra.mxu0 0
  %520 = vmatprep.subr.bf16.mxu0 0
  %521 = vmatpush1.bf16.msra.mxu0 0
  %522 = vmatprep.subr.bf16.mxu0 0
  %523 = vmatpush1.bf16.msra.mxu0 0
  %524 = vmatprep.mubr.bf16.mxu0 0
  %525 = vmatmul.mubr.bf16.gmra.mrb[0].mxu0 %v393
  %v526 = vpop.f32.mrb[0].mxu0
  %v527 = vadd.f32 0.0, %v526
  %v528 = vpop.f32.mrb[0].mxu0
  %v529 = vpop.f32.mrb[0].mxu0
  %v530 = vadd.f32 0.0, %v529
  %v531 = vpop.f32.mrb[0].mxu0
  %532 = vmatprep.mubr.bf16.mxu0 0
  %533 = vmatmul.mubr.bf16.gmra.mrb[0].mxu0 %v396
  %v534 = vpop.f32.mrb[0].mxu0
  %v535 = vadd.f32 0.0, %v534
  %v536 = vpop.f32.mrb[0].mxu0
  %v537 = vpop.f32.mrb[0].mxu0
  %v538 = vadd.f32 0.0, %v537
  %v539 = vpop.f32.mrb[0].mxu0
  %540 = vmatprep.mubr.bf16.mxu0 0
  %541 = vmatmul.mubr.bf16.gmra.mrb[0].mxu0 %v399
  %v542 = vpop.f32.mrb[0].mxu0
  %v543 = vadd.f32 0.0, %v542
  %v544 = vpop.f32.mrb[0].mxu0
  %v545 = vpop.f32.mrb[0].mxu0
  %v546 = vadd.f32 0.0, %v545
  %v547 = vpop.f32.mrb[0].mxu0
  %548 = vmatprep.mubr.bf16.mxu0 0
  %549 = vmatmul.mubr.bf16.gmra.mrb[0].mxu0 %v402
  %v550 = vpop.f32.mrb[0].mxu0
  %v551 = vadd.f32 0.0, %v550
  %v552 = vpop.f32.mrb[0].mxu0
  %v553 = vpop.f32.mrb[0].mxu0
  %v554 = vadd.f32 0.0, %v553
  %v555 = vpop.f32.mrb[0].mxu0
  %556 = vmatprep.mubr.bf16.mxu0 0
  %557 = vmatmul.mubr.bf16.gmra.mrb[0].mxu0 %v405
  %v558 = vpop.f32.mrb[0].mxu0
  %v559 = vadd.f32 0.0, %v558
  %v560 = vpop.f32.mrb[0].mxu0
  %v561 = vpop.f32.mrb[0].mxu0
  %v562 = vadd.f32 0.0, %v561
  %v563 = vpop.f32.mrb[0].mxu0
  %564 = vmatprep.mubr.bf16.mxu0 0
  %565 = vmatmul.mubr.bf16.gmra.mrb[0].mxu0 %v408
  %v566 = vpop.f32.mrb[0].mxu0
  %v567 = vadd.f32 0.0, %v566
  %v568 = vpop.f32.mrb[0].mxu0
  %v569 = vpop.f32.mrb[0].mxu0
  %v570 = vadd.f32 0.0, %v569
  %v571 = vpop.f32.mrb[0].mxu0
  %572 = vmatprep.mubr.bf16.mxu0 0
  %573 = vmatmul.mubr.bf16.gmra.mrb[0].mxu0 %v411
  %v574 = vpop.f32.mrb[0].mxu0
  %v575 = vadd.f32 0.0, %v574
  %v576 = vpop.f32.mrb[0].mxu0
  %v577 = vpop.f32.mrb[0].mxu0
  %v578 = vadd.f32 0.0, %v577
  %v579 = vpop.f32.mrb[0].mxu0
  %580 = vmatprep.mubr.bf16.mxu0 0
  %581 = vmatmul.mubr.bf16.gmra.mrb[0].mxu0 %v414
  %v582 = vpop.f32.mrb[0].mxu0
  %v583 = vadd.f32 0.0, %v582
  %v584 = vpop.f32.mrb[0].mxu0
  %v585 = vpop.f32.mrb[0].mxu0
  %v586 = vadd.f32 0.0, %v585
  %v587 = vpop.f32.mrb[0].mxu0
  %588 = vmatprep.mubr.bf16.mxu0 0
  %589 = vmatmul.mubr.bf16.gmra.mrb[0].mxu0 %v417
  %v590 = vpop.f32.mrb[0].mxu0
  %v591 = vadd.f32 0.0, %v590
  %v592 = vpop.f32.mrb[0].mxu0
  %v593 = vpop.f32.mrb[0].mxu0
  %v594 = vadd.f32 0.0, %v593
  %v595 = vpop.f32.mrb[0].mxu0
  %596 = vmatprep.mubr.bf16.mxu0 0
  %597 = vmatmul.mubr.bf16.gmra.mrb[0].mxu0 %v420
  %v598 = vpop.f32.mrb[0].mxu0
  %v599 = vadd.f32 0.0, %v598
  %v600 = vpop.f32.mrb[0].mxu0
  %v601 = vpop.f32.mrb[0].mxu0
  %v602 = vadd.f32 0.0, %v601
  %v603 = vpop.f32.mrb[0].mxu0
  %604 = vmatprep.mubr.bf16.mxu0 0
  %605 = vmatmul.mubr.bf16.gmra.mrb[0].mxu0 %v423
  %v606 = vpop.f32.mrb[0].mxu0
  %v607 = vadd.f32 0.0, %v606
  %v608 = vpop.f32.mrb[0].mxu0
  %v609 = vpop.f32.mrb[0].mxu0
  %v610 = vadd.f32 0.0, %v609
  %v611 = vpop.f32.mrb[0].mxu0
  %612 = vmatprep.mubr.bf16.mxu0 0
  %613 = vmatmul.mubr.bf16.gmra.mrb[0].mxu0 %v426
  %v614 = vpop.f32.mrb[0].mxu0
  %v615 = vadd.f32 0.0, %v614
  %v616 = vpop.f32.mrb[0].mxu0
  %v617 = vpop.f32.mrb[0].mxu0
  %v618 = vadd.f32 0.0, %v617
  %v619 = vpop.f32.mrb[0].mxu0
  %620 = vmatprep.mubr.bf16.mxu0 0
  %621 = vmatmul.mubr.bf16.gmra.mrb[0].mxu0 %v429
  %v622 = vpop.f32.mrb[0].mxu0
  %v623 = vadd.f32 0.0, %v622
  %v624 = vpop.f32.mrb[0].mxu0
  %v625 = vpop.f32.mrb[0].mxu0
  %v626 = vadd.f32 0.0, %v625
  %v627 = vpop.f32.mrb[0].mxu0
  %628 = vmatprep.mubr.bf16.mxu0 0
  %629 = vmatmul.mubr.bf16.gmra.mrb[0].mxu0 %v432
  %v630 = vpop.f32.mrb[0].mxu0
  %v631 = vadd.f32 0.0, %v630
  %v632 = vpop.f32.mrb[0].mxu0
  %v633 = vpop.f32.mrb[0].mxu0
  %v634 = vadd.f32 0.0, %v633
  %v635 = vpop.f32.mrb[0].mxu0
  %636 = vmatprep.mubr.bf16.mxu0 0
  %637 = vmatmul.mubr.bf16.gmra.mrb[0].mxu0 %v435
  %v638 = vpop.f32.mrb[0].mxu0
  %v639 = vadd.f32 0.0, %v638
  %v640 = vpop.f32.mrb[0].mxu0
  %v641 = vpop.f32.mrb[0].mxu0
  %v642 = vadd.f32 0.0, %v641
  %v643 = vpop.f32.mrb[0].mxu0
  %644 = vmatprep.mubr.bf16.mxu0 0
  %645 = vmatmul.mubr.bf16.gmra.mrb[0].mxu0 %v438
  %v646 = vpop.f32.mrb[0].mxu0
  %v647 = vadd.f32 0.0, %v646
  %v648 = vpop.f32.mrb[0].mxu0
  %v649 = vpop.f32.mrb[0].mxu0
  %v650 = vadd.f32 0.0, %v649
  %v651 = vpop.f32.mrb[0].mxu0
  %652 = vmatprep.mubr.bf16.mxu0 0
  %653 = vmatmul.mubr.bf16.gmra.mrb[0].mxu0 %v441
  %v654 = vpop.f32.mrb[0].mxu0
  %v655 = vadd.f32 0.0, %v654
  %v656 = vpop.f32.mrb[0].mxu0
  %v657 = vpop.f32.mrb[0].mxu0
  %v658 = vadd.f32 0.0, %v657
  %v659 = vpop.f32.mrb[0].mxu0
  %660 = vmatprep.mubr.bf16.mxu0 0
  %661 = vmatmul.mubr.bf16.gmra.mrb[0].mxu0 %v444
  %v662 = vpop.f32.mrb[0].mxu0
  %v663 = vadd.f32 0.0, %v662
  %v664 = vpop.f32.mrb[0].mxu0
  %v665 = vpop.f32.mrb[0].mxu0
  %v666 = vadd.f32 0.0, %v665
  %v667 = vpop.f32.mrb[0].mxu0
  %668 = vmatprep.mubr.bf16.mxu0 0
  %669 = vmatmul.mubr.bf16.gmra.mrb[0].mxu0 %v447
  %v670 = vpop.f32.mrb[0].mxu0
  %v671 = vadd.f32 0.0, %v670
  %v672 = vpop.f32.mrb[0].mxu0
  %v673 = vpop.f32.mrb[0].mxu0
  %v674 = vadd.f32 0.0, %v673
  %v675 = vpop.f32.mrb[0].mxu0
  %676 = vmatprep.mubr.bf16.mxu0 0
  %677 = vmatmul.mubr.bf16.gmra.mrb[0].mxu0 %v450
  %v678 = vpop.f32.mrb[0].mxu0
  %v679 = vadd.f32 0.0, %v678
  %v680 = vpop.f32.mrb[0].mxu0
  %v681 = vpop.f32.mrb[0].mxu0
  %v682 = vadd.f32 0.0, %v681
  %v683 = vpop.f32.mrb[0].mxu0
  %684 = vmatprep.mubr.bf16.mxu0 0
  %685 = vmatmul.mubr.bf16.gmra.mrb[0].mxu0 %v453
  %v686 = vpop.f32.mrb[0].mxu0
  %v687 = vadd.f32 0.0, %v686
  %v688 = vpop.f32.mrb[0].mxu0
  %v689 = vpop.f32.mrb[0].mxu0
  %v690 = vadd.f32 0.0, %v689
  %v691 = vpop.f32.mrb[0].mxu0
  %692 = vmatprep.mubr.bf16.mxu0 0
  %693 = vmatmul.mubr.bf16.gmra.mrb[0].mxu0 %v456
  %v694 = vpop.f32.mrb[0].mxu0
  %v695 = vadd.f32 0.0, %v694
  %v696 = vpop.f32.mrb[0].mxu0
  %v697 = vpop.f32.mrb[0].mxu0
  %v698 = vadd.f32 0.0, %v697
  %v699 = vpop.f32.mrb[0].mxu0
  %700 = vmatprep.mubr.bf16.mxu0 0
  %701 = vmatmul.mubr.bf16.gmra.mrb[0].mxu0 %v459
  %v702 = vpop.f32.mrb[0].mxu0
  %v703 = vadd.f32 0.0, %v702
  %v704 = vpop.f32.mrb[0].mxu0
  %v705 = vpop.f32.mrb[0].mxu0
  %v706 = vadd.f32 0.0, %v705
  %v707 = vpop.f32.mrb[0].mxu0
  %708 = vmatprep.mubr.bf16.mxu0 0
  %709 = vmatmul.mubr.bf16.gmra.mrb[0].mxu0 %v462
  %v710 = vpop.f32.mrb[0].mxu0
  %v711 = vadd.f32 0.0, %v710
  %v712 = vpop.f32.mrb[0].mxu0
  %v713 = vpop.f32.mrb[0].mxu0
  %v714 = vadd.f32 0.0, %v713
  %v715 = vpop.f32.mrb[0].mxu0
  %716 = vmatprep.mubr.bf16.mxu0 0
  %717 = vmatmul.mubr.bf16.gmra.mrb[0].mxu0 %v465
  %v718 = vpop.f32.mrb[0].mxu0
  %v719 = vadd.f32 0.0, %v718
  %v720 = vpop.f32.mrb[0].mxu0
  %v721 = vpop.f32.mrb[0].mxu0
  %v722 = vadd.f32 0.0, %v721
  %v723 = vpop.f32.mrb[0].mxu0
  %724 = vmatprep.mubr.bf16.mxu0 0
  %725 = vmatmul.mubr.bf16.gmra.mrb[0].mxu0 %v468
  %v726 = vpop.f32.mrb[0].mxu0
  %v727 = vadd.f32 0.0, %v726
  %v728 = vpop.f32.mrb[0].mxu0
  %v729 = vpop.f32.mrb[0].mxu0
  %v730 = vadd.f32 0.0, %v729
  %v731 = vpop.f32.mrb[0].mxu0
  %732 = vmatprep.mubr.bf16.mxu0 0
  %733 = vmatmul.mubr.bf16.gmra.mrb[0].mxu0 %v471
  %v734 = vpop.f32.mrb[0].mxu0
  %v735 = vadd.f32 0.0, %v734
  %v736 = vpop.f32.mrb[0].mxu0
  %v737 = vpop.f32.mrb[0].mxu0
  %v738 = vadd.f32 0.0, %v737
  %v739 = vpop.f32.mrb[0].mxu0
  %740 = vmatprep.mubr.bf16.mxu0 0
  %741 = vmatmul.mubr.bf16.gmra.mrb[0].mxu0 %v474
  %v742 = vpop.f32.mrb[0].mxu0
  %v743 = vadd.f32 0.0, %v742
  %v744 = vpop.f32.mrb[0].mxu0
  %v745 = vpop.f32.mrb[0].mxu0
  %v746 = vadd.f32 0.0, %v745
  %v747 = vpop.f32.mrb[0].mxu0
  %748 = vmatprep.mubr.bf16.mxu0 0
  %749 = vmatmul.mubr.bf16.gmra.mrb[0].mxu0 %v477
  %v750 = vpop.f32.mrb[0].mxu0
  %v751 = vadd.f32 0.0, %v750
  %v752 = vpop.f32.mrb[0].mxu0
  %v753 = vpop.f32.mrb[0].mxu0
  %v754 = vadd.f32 0.0, %v753
  %v755 = vpop.f32.mrb[0].mxu0
  %756 = vmatprep.mubr.bf16.mxu0 0
  %757 = vmatmul.mubr.bf16.gmra.mrb[0].mxu0 %v480
  %v758 = vpop.f32.mrb[0].mxu0
  %v759 = vadd.f32 0.0, %v758
  %v760 = vpop.f32.mrb[0].mxu0
  %v761 = vpop.f32.mrb[0].mxu0
  %v762 = vadd.f32 0.0, %v761
  %v763 = vpop.f32.mrb[0].mxu0
  %764 = vmatprep.mubr.bf16.mxu0 0
  %765 = vmatmul.mubr.bf16.gmra.mrb[0].mxu0 %v483
  %v766 = vpop.f32.mrb[0].mxu0
  %v767 = vadd.f32 0.0, %v766
  %v768 = vpop.f32.mrb[0].mxu0
  %v769 = vpop.f32.mrb[0].mxu0
  %v770 = vadd.f32 0.0, %v769
  %v771 = vpop.f32.mrb[0].mxu0
  %772 = vmatprep.mubr.bf16.mxu0 0
  %773 = vmatmul.mubr.bf16.gmra.mrb[0].mxu0 %v486
  %v774 = vpop.f32.mrb[0].mxu0
  %v775 = vadd.f32 0.0, %v774
  %v776 = vpop.f32.mrb[0].mxu0
  %v777 = vpop.f32.mrb[0].mxu0
  %v778 = vadd.f32 0.0, %v777
  %v779 = vpop.f32.mrb[0].mxu0
  %780 = vdwg.mxu0
  %v781 = vadd.f32 %v83, %v527
  %v782 = vadd.f32 %v84, %v530
  %v783 = vadd.f32 %v85, %v535
  %v784 = vadd.f32 %v86, %v538
  %v785 = vadd.f32 %v87, %v543
  %v786 = vadd.f32 %v88, %v546
  %v787 = vadd.f32 %v89, %v551
  %v788 = vadd.f32 %v90, %v554
  %v789 = vadd.f32 %v91, %v559
  %v790 = vadd.f32 %v92, %v562
  %v791 = vadd.f32 %v93, %v567
  %v792 = vadd.f32 %v94, %v570
  %v793 = vadd.f32 %v95, %v575
  %v794 = vadd.f32 %v96, %v578
  %v795 = vadd.f32 %v97, %v583
  %v796 = vadd.f32 %v98, %v586
  %v797 = vadd.f32 %v99, %v591
  %v798 = vadd.f32 %v100, %v594
  %v799 = vadd.f32 %v101, %v599
  %v800 = vadd.f32 %v102, %v602
  %v801 = vadd.f32 %v103, %v607
  %v802 = vadd.f32 %v104, %v610
  %v803 = vadd.f32 %v105, %v615
  %v804 = vadd.f32 %v106, %v618
  %v805 = vadd.f32 %v107, %v623
  %v806 = vadd.f32 %v108, %v626
  %v807 = vadd.f32 %v109, %v631
  %v808 = vadd.f32 %v110, %v634
  %v809 = vadd.f32 %v111, %v639
  %v810 = vadd.f32 %v112, %v642
  %v811 = vadd.f32 %v113, %v647
  %v812 = vadd.f32 %v114, %v650
  %v813 = vadd.f32 %v115, %v655
  %v814 = vadd.f32 %v116, %v658
  %v815 = vadd.f32 %v117, %v663
  %v816 = vadd.f32 %v118, %v666
  %v817 = vadd.f32 %v119, %v671
  %v818 = vadd.f32 %v120, %v674
  %v819 = vadd.f32 %v121, %v679
  %v820 = vadd.f32 %v122, %v682
  %v821 = vadd.f32 %v123, %v687
  %v822 = vadd.f32 %v124, %v690
  %v823 = vadd.f32 %v125, %v695
  %v824 = vadd.f32 %v126, %v698
  %v825 = vadd.f32 %v127, %v703
  %v826 = vadd.f32 %v128, %v706
  %v827 = vadd.f32 %v129, %v711
  %v828 = vadd.f32 %v130, %v714
  %v829 = vadd.f32 %v131, %v719
  %v830 = vadd.f32 %v132, %v722
  %v831 = vadd.f32 %v133, %v727
  %v832 = vadd.f32 %v134, %v730
  %v833 = vadd.f32 %v135, %v735
  %v834 = vadd.f32 %v136, %v738
  %v835 = vadd.f32 %v137, %v743
  %v836 = vadd.f32 %v138, %v746
  %v837 = vadd.f32 %v139, %v751
  %v838 = vadd.f32 %v140, %v754
  %v839 = vadd.f32 %v141, %v759
  %v840 = vadd.f32 %v142, %v762
  %v841 = vadd.f32 %v143, %v767
  %v842 = vadd.f32 %v144, %v770
  %v843 = vadd.f32 %v145, %v775
  %v844 = vadd.f32 %v146, %v778
  %845 = vst [vmem:[#allocation2] sm:$0xff] %v781
  %846 = vst [vmem:[#allocation2 + $0x8] sm:$0xff] %v782
  %847 = vst [vmem:[#allocation2 + $0x10] sm:$0xff] %v783
  %848 = vst [vmem:[#allocation2 + $0x18] sm:$0xff] %v784
  %849 = vst [vmem:[#allocation2 + $0x20] sm:$0xff] %v785
  %850 = vst [vmem:[#allocation2 + $0x28] sm:$0xff] %v786
  %851 = vst [vmem:[#allocation2 + $0x30] sm:$0xff] %v787
  %852 = vst [vmem:[#allocation2 + $0x38] sm:$0xff] %v788
  %853 = vst [vmem:[#allocation2 + $0x40] sm:$0xff] %v789
  %854 = vst [vmem:[#allocation2 + $0x48] sm:$0xff] %v790
  %855 = vst [vmem:[#allocation2 + $0x50] sm:$0xff] %v791
  %856 = vst [vmem:[#allocation2 + $0x58] sm:$0xff] %v792
  %857 = vst [vmem:[#allocation2 + $0x60] sm:$0xff] %v793
  %858 = vst [vmem:[#allocation2 + $0x68] sm:$0xff] %v794
  %859 = vst [vmem:[#allocation2 + $0x70] sm:$0xff] %v795
  %860 = vst [vmem:[#allocation2 + $0x78] sm:$0xff] %v796
  %861 = vst [vmem:[#allocation2 + $0x80] sm:$0xff] %v797
  %862 = vst [vmem:[#allocation2 + $0x88] sm:$0xff] %v798
  %863 = vst [vmem:[#allocation2 + $0x90] sm:$0xff] %v799
  %864 = vst [vmem:[#allocation2 + $0x98] sm:$0xff] %v800
  %865 = vst [vmem:[#allocation2 + $0xa0] sm:$0xff] %v801
  %866 = vst [vmem:[#allocation2 + $0xa8] sm:$0xff] %v802
  %867 = vst [vmem:[#allocation2 + $0xb0] sm:$0xff] %v803
  %868 = vst [vmem:[#allocation2 + $0xb8] sm:$0xff] %v804
  %869 = vst [vmem:[#allocation2 + $0xc0] sm:$0xff] %v805
  %870 = vst [vmem:[#allocation2 + $0xc8] sm:$0xff] %v806
  %871 = vst [vmem:[#allocation2 + $0xd0] sm:$0xff] %v807
  %872 = vst [vmem:[#allocation2 + $0xd8] sm:$0xff] %v808
  %873 = vst [vmem:[#allocation2 + $0xe0] sm:$0xff] %v809
  %874 = vst [vmem:[#allocation2 + $0xe8] sm:$0xff] %v810
  %875 = vst [vmem:[#allocation2 + $0xf0] sm:$0xff] %v811
  %876 = vst [vmem:[#allocation2 + $0xf8] sm:$0xff] %v812
  %877 = vst [vmem:[#allocation2 + $0x100] sm:$0xff] %v813
  %878 = vst [vmem:[#allocation2 + $0x108] sm:$0xff] %v814
  %879 = vst [vmem:[#allocation2 + $0x110] sm:$0xff] %v815
  %880 = vst [vmem:[#allocation2 + $0x118] sm:$0xff] %v816
  %881 = vst [vmem:[#allocation2 + $0x120] sm:$0xff] %v817
  %882 = vst [vmem:[#allocation2 + $0x128] sm:$0xff] %v818
  %883 = vst [vmem:[#allocation2 + $0x130] sm:$0xff] %v819
  %884 = vst [vmem:[#allocation2 + $0x138] sm:$0xff] %v820
  %885 = vst [vmem:[#allocation2 + $0x140] sm:$0xff] %v821
  %886 = vst [vmem:[#allocation2 + $0x148] sm:$0xff] %v822
  %887 = vst [vmem:[#allocation2 + $0x150] sm:$0xff] %v823
  %888 = vst [vmem:[#allocation2 + $0x158] sm:$0xff] %v824
  %889 = vst [vmem:[#allocation2 + $0x160] sm:$0xff] %v825
  %890 = vst [vmem:[#allocation2 + $0x168] sm:$0xff] %v826
  %891 = vst [vmem:[#allocation2 + $0x170] sm:$0xff] %v827
  %892 = vst [vmem:[#allocation2 + $0x178] sm:$0xff] %v828
  %893 = vst [vmem:[#allocation2 + $0x180] sm:$0xff] %v829
  %894 = vst [vmem:[#allocation2 + $0x188] sm:$0xff] %v830
  %895 = vst [vmem:[#allocation2 + $0x190] sm:$0xff] %v831
  %896 = vst [vmem:[#allocation2 + $0x198] sm:$0xff] %v832
  %897 = vst [vmem:[#allocation2 + $0x1a0] sm:$0xff] %v833
  %898 = vst [vmem:[#allocation2 + $0x1a8] sm:$0xff] %v834
  %899 = vst [vmem:[#allocation2 + $0x1b0] sm:$0xff] %v835
  %900 = vst [vmem:[#allocation2 + $0x1b8] sm:$0xff] %v836
  %901 = vst [vmem:[#allocation2 + $0x1c0] sm:$0xff] %v837
  %902 = vst [vmem:[#allocation2 + $0x1c8] sm:$0xff] %v838
  %903 = vst [vmem:[#allocation2 + $0x1d0] sm:$0xff] %v839
  %904 = vst [vmem:[#allocation2 + $0x1d8] sm:$0xff] %v840
  %905 = vst [vmem:[#allocation2 + $0x1e0] sm:$0xff] %v841
  %906 = vst [vmem:[#allocation2 + $0x1e8] sm:$0xff] %v842
  %907 = vst [vmem:[#allocation2 + $0x1f0] sm:$0xff] %v843
  %908 = vst [vmem:[#allocation2 + $0x1f8] sm:$0xff] %v844
  // Predicated region
  $region18: #{meta_conv2d_forward.1} parent=0 // pred_check
    %p909 = pneg %p15
  $region19: #{meta_conv2d_forward.1} parent=0 // pred_check_branch
    %911 = sbr.rel (%p909) target = $region21
  $region20: #{meta_conv2d_forward.1} parent=0 // pred_region
    %v912 = vld [vmem:[#allocation2] sm:$0xff]
    %v913 = vld [vmem:[#allocation2 + $0x8] sm:$0xff]
    %v914 = vld [vmem:[#allocation2 + $0x10] sm:$0xff]
    %v915 = vld [vmem:[#allocation2 + $0x18] sm:$0xff]
    %v916 = vld [vmem:[#allocation2 + $0x20] sm:$0xff]
    %v917 = vld [vmem:[#allocation2 + $0x28] sm:$0xff]
    %v918 = vld [vmem:[#allocation2 + $0x30] sm:$0xff]
    %v919 = vld [vmem:[#allocation2 + $0x38] sm:$0xff]
    %v920 = vld [vmem:[#allocation2 + $0x40] sm:$0xff]
    %v921 = vld [vmem:[#allocation2 + $0x48] sm:$0xff]
    %v922 = vld [vmem:[#allocation2 + $0x50] sm:$0xff]
    %v923 = vld [vmem:[#allocation2 + $0x58] sm:$0xff]
    %v924 = vld [vmem:[#allocation2 + $0x60] sm:$0xff]
    %v925 = vld [vmem:[#allocation2 + $0x68] sm:$0xff]
    %v926 = vld [vmem:[#allocation2 + $0x70] sm:$0xff]
    %v927 = vld [vmem:[#allocation2 + $0x78] sm:$0xff]
    %v928 = vld [vmem:[#allocation2 + $0x80] sm:$0xff]
    %v929 = vld [vmem:[#allocation2 + $0x88] sm:$0xff]
    %v930 = vld [vmem:[#allocation2 + $0x90] sm:$0xff]
    %v931 = vld [vmem:[#allocation2 + $0x98] sm:$0xff]
    %v932 = vld [vmem:[#allocation2 + $0xa0] sm:$0xff]
    %v933 = vld [vmem:[#allocation2 + $0xa8] sm:$0xff]
    %v934 = vld [vmem:[#allocation2 + $0xb0] sm:$0xff]
    %v935 = vld [vmem:[#allocation2 + $0xb8] sm:$0xff]
    %v936 = vld [vmem:[#allocation2 + $0xc0] sm:$0xff]
    %v937 = vld [vmem:[#allocation2 + $0xc8] sm:$0xff]
    %v938 = vld [vmem:[#allocation2 + $0xd0] sm:$0xff]
    %v939 = vld [vmem:[#allocation2 + $0xd8] sm:$0xff]
    %v940 = vld [vmem:[#allocation2 + $0xe0] sm:$0xff]
    %v941 = vld [vmem:[#allocation2 + $0xe8] sm:$0xff]
    %v942 = vld [vmem:[#allocation2 + $0xf0] sm:$0xff]
    %v943 = vld [vmem:[#allocation2 + $0xf8] sm:$0xff]
    %v944 = vld [vmem:[#allocation2 + $0x100] sm:$0xff]
    %v945 = vld [vmem:[#allocation2 + $0x108] sm:$0xff]
    %v946 = vld [vmem:[#allocation2 + $0x110] sm:$0xff]
    %v947 = vld [vmem:[#allocation2 + $0x118] sm:$0xff]
    %v948 = vld [vmem:[#allocation2 + $0x120] sm:$0xff]
    %v949 = vld [vmem:[#allocation2 + $0x128] sm:$0xff]
    %v950 = vld [vmem:[#allocation2 + $0x130] sm:$0xff]
    %v951 = vld [vmem:[#allocation2 + $0x138] sm:$0xff]
    %v952 = vld [vmem:[#allocation2 + $0x140] sm:$0xff]
    %v953 = vld [vmem:[#allocation2 + $0x148] sm:$0xff]
    %v954 = vld [vmem:[#allocation2 + $0x150] sm:$0xff]
    %v955 = vld [vmem:[#allocation2 + $0x158] sm:$0xff]
    %v956 = vld [vmem:[#allocation2 + $0x160] sm:$0xff]
    %v957 = vld [vmem:[#allocation2 + $0x168] sm:$0xff]
    %v958 = vld [vmem:[#allocation2 + $0x170] sm:$0xff]
    %v959 = vld [vmem:[#allocation2 + $0x178] sm:$0xff]
    %v960 = vld [vmem:[#allocation2 + $0x180] sm:$0xff]
    %v961 = vld [vmem:[#allocation2 + $0x188] sm:$0xff]
    %v962 = vld [vmem:[#allocation2 + $0x190] sm:$0xff]
    %v963 = vld [vmem:[#allocation2 + $0x198] sm:$0xff]
    %v964 = vld [vmem:[#allocation2 + $0x1a0] sm:$0xff]
    %v965 = vld [vmem:[#allocation2 + $0x1a8] sm:$0xff]
    %v966 = vld [vmem:[#allocation2 + $0x1b0] sm:$0xff]
    %v967 = vld [vmem:[#allocation2 + $0x1b8] sm:$0xff]
    %v968 = vld [vmem:[#allocation2 + $0x1c0] sm:$0xff]
    %v969 = vld [vmem:[#allocation2 + $0x1c8] sm:$0xff]
    %v970 = vld [vmem:[#allocation2 + $0x1d0] sm:$0xff]
    %v971 = vld [vmem:[#allocation2 + $0x1d8] sm:$0xff]
    %v972 = vld [vmem:[#allocation2 + $0x1e0] sm:$0xff]
    %v973 = vld [vmem:[#allocation2 + $0x1e8] sm:$0xff]
    %v974 = vld [vmem:[#allocation2 + $0x1f0] sm:$0xff]
    %v975 = vld [vmem:[#allocation2 + $0x1f8] sm:$0xff]
    %v976 = vld [vmem:[%s2] sm:$0x1]
    %v978 = vlaneseq
    %v979 = vshrl.u32 %v978, 7
    %v980 = vsub.s32 0, %v979
    %v981 = vrot.slane %v976, %v980
    %v983 = vadd.f32 %v912, %v981
    %v984 = vadd.f32 %v913, %v981
    %v985 = vadd.f32 %v914, %v981
    %v986 = vadd.f32 %v915, %v981
    %v987 = vadd.f32 %v916, %v981
    %v988 = vadd.f32 %v917, %v981
    %v989 = vadd.f32 %v918, %v981
    %v990 = vadd.f32 %v919, %v981
    %v991 = vadd.f32 %v920, %v981
    %v992 = vadd.f32 %v921, %v981
    %v993 = vadd.f32 %v922, %v981
    %v994 = vadd.f32 %v923, %v981
    %v995 = vadd.f32 %v924, %v981
    %v996 = vadd.f32 %v925, %v981
    %v997 = vadd.f32 %v926, %v981
    %v998 = vadd.f32 %v927, %v981
    %v999 = vadd.f32 %v928, %v981
    %v1000 = vadd.f32 %v929, %v981
    %v1001 = vadd.f32 %v930, %v981
    %v1002 = vadd.f32 %v931, %v981
    %v1003 = vadd.f32 %v932, %v981
    %v1004 = vadd.f32 %v933, %v981
    %v1005 = vadd.f32 %v934, %v981
    %v1006 = vadd.f32 %v935, %v981
    %v1007 = vadd.f32 %v936, %v981
    %v1008 = vadd.f32 %v937, %v981
    %v1009 = vadd.f32 %v938, %v981
    %v1010 = vadd.f32 %v939, %v981
    %v1011 = vadd.f32 %v940, %v981
    %v1012 = vadd.f32 %v941, %v981
    %v1013 = vadd.f32 %v942, %v981
    %v1014 = vadd.f32 %v943, %v981
    %v1015 = vadd.f32 %v944, %v981
    %v1016 = vadd.f32 %v945, %v981
    %v1017 = vadd.f32 %v946, %v981
    %v1018 = vadd.f32 %v947, %v981
    %v1019 = vadd.f32 %v948, %v981
    %v1020 = vadd.f32 %v949, %v981
    %v1021 = vadd.f32 %v950, %v981
    %v1022 = vadd.f32 %v951, %v981
    %v1023 = vadd.f32 %v952, %v981
    %v1024 = vadd.f32 %v953, %v981
    %v1025 = vadd.f32 %v954, %v981
    %v1026 = vadd.f32 %v955, %v981
    %v1027 = vadd.f32 %v956, %v981
    %v1028 = vadd.f32 %v957, %v981
    %v1029 = vadd.f32 %v958, %v981
    %v1030 = vadd.f32 %v959, %v981
    %v1031 = vadd.f32 %v960, %v981
    %v1032 = vadd.f32 %v961, %v981
    %v1033 = vadd.f32 %v962, %v981
    %v1034 = vadd.f32 %v963, %v981
    %v1035 = vadd.f32 %v964, %v981
    %v1036 = vadd.f32 %v965, %v981
    %v1037 = vadd.f32 %v966, %v981
    %v1038 = vadd.f32 %v967, %v981
    %v1039 = vadd.f32 %v968, %v981
    %v1040 = vadd.f32 %v969, %v981
    %v1041 = vadd.f32 %v970, %v981
    %v1042 = vadd.f32 %v971, %v981
    %v1043 = vadd.f32 %v972, %v981
    %v1044 = vadd.f32 %v973, %v981
    %v1045 = vadd.f32 %v974, %v981
    %v1046 = vadd.f32 %v975, %v981
    %1047 = vst [vmem:[%s3] sm:$0xff] %v983
    %1048 = vst [vmem:[%s3 + $0x8] sm:$0xff] %v984
    %1049 = vst [vmem:[%s3 + $0x10] sm:$0xff] %v985
    %1050 = vst [vmem:[%s3 + $0x18] sm:$0xff] %v986
    %1051 = vst [vmem:[%s3 + $0x20] sm:$0xff] %v987
    %1052 = vst [vmem:[%s3 + $0x28] sm:$0xff] %v988
    %1053 = vst [vmem:[%s3 + $0x30] sm:$0xff] %v989
    %1054 = vst [vmem:[%s3 + $0x38] sm:$0xff] %v990
    %1055 = vst [vmem:[%s3 + $0x40] sm:$0xff] %v991
    %1056 = vst [vmem:[%s3 + $0x48] sm:$0xff] %v992
    %1057 = vst [vmem:[%s3 + $0x50] sm:$0xff] %v993
    %1058 = vst [vmem:[%s3 + $0x58] sm:$0xff] %v994
    %1059 = vst [vmem:[%s3 + $0x60] sm:$0xff] %v995
    %1060 = vst [vmem:[%s3 + $0x68] sm:$0xff] %v996
    %1061 = vst [vmem:[%s3 + $0x70] sm:$0xff] %v997
    %1062 = vst [vmem:[%s3 + $0x78] sm:$0xff] %v998
    %1063 = vst [vmem:[%s3 + $0x80] sm:$0xff] %v999
    %1064 = vst [vmem:[%s3 + $0x88] sm:$0xff] %v1000
    %1065 = vst [vmem:[%s3 + $0x90] sm:$0xff] %v1001
    %1066 = vst [vmem:[%s3 + $0x98] sm:$0xff] %v1002
    %1067 = vst [vmem:[%s3 + $0xa0] sm:$0xff] %v1003
    %1068 = vst [vmem:[%s3 + $0xa8] sm:$0xff] %v1004
    %1069 = vst [vmem:[%s3 + $0xb0] sm:$0xff] %v1005
    %1070 = vst [vmem:[%s3 + $0xb8] sm:$0xff] %v1006
    %1071 = vst [vmem:[%s3 + $0xc0] sm:$0xff] %v1007
    %1072 = vst [vmem:[%s3 + $0xc8] sm:$0xff] %v1008
    %1073 = vst [vmem:[%s3 + $0xd0] sm:$0xff] %v1009
    %1074 = vst [vmem:[%s3 + $0xd8] sm:$0xff] %v1010
    %1075 = vst [vmem:[%s3 + $0xe0] sm:$0xff] %v1011
    %1076 = vst [vmem:[%s3 + $0xe8] sm:$0xff] %v1012
    %1077 = vst [vmem:[%s3 + $0xf0] sm:$0xff] %v1013
    %1078 = vst [vmem:[%s3 + $0xf8] sm:$0xff] %v1014
    %1079 = vst [vmem:[%s3 + $0x100] sm:$0xff] %v1015
    %1080 = vst [vmem:[%s3 + $0x108] sm:$0xff] %v1016
    %1081 = vst [vmem:[%s3 + $0x110] sm:$0xff] %v1017
    %1082 = vst [vmem:[%s3 + $0x118] sm:$0xff] %v1018
    %1083 = vst [vmem:[%s3 + $0x120] sm:$0xff] %v1019
    %1084 = vst [vmem:[%s3 + $0x128] sm:$0xff] %v1020
    %1085 = vst [vmem:[%s3 + $0x130] sm:$0xff] %v1021
    %1086 = vst [vmem:[%s3 + $0x138] sm:$0xff] %v1022
    %1087 = vst [vmem:[%s3 + $0x140] sm:$0xff] %v1023
    %1088 = vst [vmem:[%s3 + $0x148] sm:$0xff] %v1024
    %1089 = vst [vmem:[%s3 + $0x150] sm:$0xff] %v1025
    %1090 = vst [vmem:[%s3 + $0x158] sm:$0xff] %v1026
    %1091 = vst [vmem:[%s3 + $0x160] sm:$0xff] %v1027
    %1092 = vst [vmem:[%s3 + $0x168] sm:$0xff] %v1028
    %1093 = vst [vmem:[%s3 + $0x170] sm:$0xff] %v1029
    %1094 = vst [vmem:[%s3 + $0x178] sm:$0xff] %v1030
    %1095 = vst [vmem:[%s3 + $0x180] sm:$0xff] %v1031
    %1096 = vst [vmem:[%s3 + $0x188] sm:$0xff] %v1032
    %1097 = vst [vmem:[%s3 + $0x190] sm:$0xff] %v1033
    %1098 = vst [vmem:[%s3 + $0x198] sm:$0xff] %v1034
    %1099 = vst [vmem:[%s3 + $0x1a0] sm:$0xff] %v1035
    %1100 = vst [vmem:[%s3 + $0x1a8] sm:$0xff] %v1036
    %1101 = vst [vmem:[%s3 + $0x1b0] sm:$0xff] %v1037
    %1102 = vst [vmem:[%s3 + $0x1b8] sm:$0xff] %v1038
    %1103 = vst [vmem:[%s3 + $0x1c0] sm:$0xff] %v1039
    %1104 = vst [vmem:[%s3 + $0x1c8] sm:$0xff] %v1040
    %1105 = vst [vmem:[%s3 + $0x1d0] sm:$0xff] %v1041
    %1106 = vst [vmem:[%s3 + $0x1d8] sm:$0xff] %v1042
    %1107 = vst [vmem:[%s3 + $0x1e0] sm:$0xff] %v1043
    %1108 = vst [vmem:[%s3 + $0x1e8] sm:$0xff] %v1044
    %1109 = vst [vmem:[%s3 + $0x1f0] sm:$0xff] %v1045
    %1110 = vst [vmem:[%s3 + $0x1f8] sm:$0xff] %v1046
  $region21: #{meta_conv2d_forward.1} parent=0 // pred_fallthru
    _
  // Predicated region
  $region22: #{meta_conv2d_forward.1} parent=0 // pred_check
    _
  $region23: #{meta_conv2d_forward.1} parent=0 // pred_check_branch
    %1112 = sbr.rel (0) target = $region25
  $region24: #{meta_conv2d_forward.1} parent=0 // pred_region
    _
  $region25: #{meta_conv2d_forward.1} parent=0 // pred_fallthru
    _
  // Predicated region
  $region26: #{meta_conv2d_forward.1} parent=0 // pred_check
    _
  $region27: #{meta_conv2d_forward.1} parent=0 // pred_check_branch
    %1114 = sbr.rel (0) target = $region29
  $region28: #{meta_conv2d_forward.1} parent=0 // pred_region
    _
  $region29: #{meta_conv2d_forward.1} parent=0 // pred_fallthru
    _

</llo_original>
